<compile_context>
chip_gen: v5e
topology: v5e:2x2
jax: 0.10.0
libtpu: 0.0.40
codegen_flags: <defaults>
</compile_context>

<pallas_src>
import functools
import itertools

import numpy as np
import jax
import jax.numpy as jnp
from jax.experimental import pallas as pl
from jax.experimental.pallas import tpu as pltpu

# Module "parameters" (loss_weight dict from __init__), fixed deterministically.
COST_ENT_TYPE = 1.0   # loss_weight['ent_type']
COST_ENT_SPAN = 2.0   # loss_weight['ent_span']
# TODO(synk): boundary_softmax=True branch (softmax over ent_start/end_logits)
# is not wired up; the default branch (p_left / p_right) is implemented.


def _cdiv(a, b):
    return (a + b - 1) // b


def _round_up(x, m):
    return _cdiv(x, m) * m


def _row_tiling(n, tm_target):
    """Pick (tm, grid_rows): tm % 8 == 0, minimal padded rows, and >= 2 grid
    steps when possible so the parallel row axis can shard across both
    TensorCores on v7x (no effect on v5e/v6e)."""
    min_steps = 2 if n > 8 else 1
    start = max(_cdiv(n, tm_target), min_steps)
    best = None
    for steps in range(start, start + 9):      # tiny bounded search
        tm = max(_round_up(_cdiv(n, steps), 8), 8)
        grid_rows = _cdiv(n, tm)
        pad = grid_rows * tm - n
        cand = (pad, grid_rows, tm)
        if best is None or cand[:2] < best[:2]:
            best = cand
        if pad == 0:
            break
    _, grid_rows, tm = best
    return tm, grid_rows


def _gold_tiling(g, tn_target):
    """Lane-dense gold tiling: tn multiple of 128, smallest padded width."""
    col_steps = _cdiv(_round_up(g, 128), tn_target)
    tn = _round_up(_cdiv(g, col_steps), 128)
    return tn, col_steps


def _cost_kernel(tl_ref, pleft_ref, pright_ref, oht_ref, ohs_ref, ohe_ref,
                 cost_ref, acc_ref, *, compute_dtype, approx_reciprocal):
    # Softmax over the class dimension in f32.
    logits = tl_ref[...]                                   # [tm, C] f32
    m = jnp.max(logits, axis=-1, keepdims=True)
    e = jnp.exp(logits - m)
    denom = jnp.sum(e, axis=-1, keepdims=True)
    probs = e * pl.reciprocal(denom, approx=approx_reciprocal)  # EUP slot if approx

    # Weights / sign are pre-folded into the one-hot gather matrices, so the
    # MXU output *is* the final cost.  Accumulate the three matmul results
    # through an f32 VMEM scratch (bounds vreg pressure; no wide VPU epilogue).
    acc_ref[...] = jnp.dot(probs.astype(compute_dtype), oht_ref[...],
                           preferred_element_type=jnp.float32)
    acc_ref[...] += jnp.dot(pleft_ref[...].astype(compute_dtype), ohs_ref[...],
                            preferred_element_type=jnp.float32)
    acc_ref[...] += jnp.dot(pright_ref[...].astype(compute_dtype), ohe_ref[...],
                            preferred_element_type=jnp.float32)
    cost_ref[...] = acc_ref[...].astype(cost_ref.dtype)


def entity_match_cost(ent_type_logits, p_left, p_right,
                      gold_ent_type, gold_ent_start, gold_ent_end, *,
                      compute_dtype=jnp.bfloat16, out_dtype=jnp.float32,
                      approx_reciprocal=True, tm_target=256, tn_target=512):
    """cost[b,i,j] = -w_type * softmax(type_logits)[b,i,gold_type[j]]
                     -w_span * (p_left[b,i,gold_start[j]] + p_right[b,i,gold_end[j]])

    compute_dtype: bf16 default (native MXU on v5e/v6e/v7x, halves one-hot
    bytes); pass jnp.float32 (+ approx_reciprocal=False) for an exact path.
    out_dtype: f32 default; bf16 halves the output writeback of this
    HBM-bound kernel when only the host matcher consumes it.
    """
    bsz, num_gen, num_classes = ent_type_logits.shape
    seq_len = p_left.shape[-1]
    n = bsz * num_gen
    g = int(gold_ent_type.shape[0])
    if g == 0:  # no gold entities anywhere: empty cost, nothing to match
        return jnp.zeros((bsz, num_gen, 0), jnp.float32)

    tm, grid_rows = _row_tiling(n, tm_target)
    tn, col_steps = _gold_tiling(g, tn_target)
    n_pad, g_pad = grid_rows * tm, col_steps * tn

    # Large operands: reshape only (no HBM copy).  Row padding only triggers
    # when n has no tile-friendly factorization (rare with the tm search).
    tl = ent_type_logits.reshape(n, num_classes).astype(jnp.float32)
    pls = p_left.reshape(n, seq_len)
    prs = p_right.reshape(n, seq_len)
    if n_pad != n:
        tl = jnp.pad(tl, ((0, n_pad - n), (0, 0)))
        pls = jnp.pad(pls, ((0, n_pad - n), (0, 0)))
        prs = jnp.pad(prs, ((0, n_pad - n), (0, 0)))

    # Small weighted, sign-folded one-hot gather matrices, built directly at
    # the padded width (index -1 -> all-zero column -> zero cost contribution).
    def gather_matrix(idx, depth, weight):
        idx = jnp.pad(idx.astype(jnp.int32), (0, g_pad - g), constant_values=-1)
        oh = jax.nn.one_hot(idx, depth, dtype=jnp.float32)       # [g_pad, depth]
        return (-weight * oh).T.astype(compute_dtype)            # [depth, g_pad]

    oh_type = gather_matrix(gold_ent_type, num_classes, COST_ENT_TYPE)
    oh_start = gather_matrix(gold_ent_start, seq_len, COST_ENT_SPAN)
    oh_end = gather_matrix(gold_ent_end, seq_len, COST_ENT_SPAN)

    cd_b = jnp.dtype(compute_dtype).itemsize
    out_b = jnp.dtype(out_dtype).itemsize
    span_b = pls.dtype.itemsize
    vmem_need = (2 * tm * num_classes * 4                        # logits tiles
                 + 2 * 2 * tm * seq_len * span_b                 # p_left/p_right tiles
                 + 2 * (num_classes + 2 * seq_len) * tn * cd_b   # one-hot tiles
                 + 2 * tm * tn * out_b                           # output tiles
                 + tm * tn * 4)                                  # f32 accumulator
    vmem_limit = int(max(vmem_need + (8 << 20), 32 << 20))

    cost_estimate = pl.CostEstimate(
        flops=int(2 * n_pad * g_pad * (num_classes + 2 * seq_len)
                  + 6 * n_pad * num_classes),
        transcendentals=int(n_pad * (num_classes + 1)),
        bytes_accessed=int(n_pad * num_classes * 4
                           + 2 * n_pad * seq_len * span_b
                           + (num_classes + 2 * seq_len) * g_pad * cd_b
                           + n_pad * g_pad * out_b),
    )

    kernel = functools.partial(_cost_kernel, compute_dtype=compute_dtype,
                               approx_reciprocal=approx_reciprocal)

    cost = pl.pallas_call(
        kernel,
        out_shape=jax.ShapeDtypeStruct((n_pad, g_pad), out_dtype),
        grid=(grid_rows, col_steps),
        in_specs=[
            pl.BlockSpec((tm, num_classes), lambda i, j: (i, 0)),   # logits
            pl.BlockSpec((tm, seq_len), lambda i, j: (i, 0)),       # p_left
            pl.BlockSpec((tm, seq_len), lambda i, j: (i, 0)),       # p_right
            # One-hots are resident along the row axis; the gold axis tiling
            # bounds their VMEM footprint (v7x: 64 MiB).
            pl.BlockSpec((num_classes, tn), lambda i, j: (0, j)),
            pl.BlockSpec((seq_len, tn), lambda i, j: (0, j)),
            pl.BlockSpec((seq_len, tn), lambda i, j: (0, j)),
        ],
        out_specs=pl.BlockSpec((tm, tn), lambda i, j: (i, j)),
        scratch_shapes=[pltpu.VMEM((tm, tn), jnp.float32)],
        compiler_params=pltpu.CompilerParams(
            dimension_semantics=("parallel", "parallel"),
            vmem_limit_bytes=vmem_limit),
        cost_estimate=cost_estimate,
    )(tl, pls, prs, oh_type, oh_start, oh_end)

    return cost[:n, :g].reshape(bsz, num_gen, g)


def _linear_sum_assignment(c):
    """Exact assignment for a small rectangular cost matrix (rows >= cols)."""
    # TODO(synk): Hungarian algorithm is sequential / data-dependent; no clean
    # Pallas equivalent, so it runs on host (exact brute force at toy sizes).
    c = np.asarray(c)
    n_rows, n_cols = c.shape
    assert n_rows >= n_cols, "expected more predictions than gold entities"
    best_rows, best_cost = (), np.inf
    for perm in itertools.permutations(range(n_rows), n_cols):
        total = c[list(perm), np.arange(n_cols)].sum()
        if total < best_cost:
            best_cost, best_rows = total, perm
    rows = np.asarray(best_rows, dtype=np.int64)
    cols = np.arange(n_cols, dtype=np.int64)
    order = np.argsort(rows)
    return rows[order], cols[order]


def entity_matcher_forward(outputs, targets, **cost_kwargs):
    gold_ent_type = jnp.concatenate([t['ent_type'] for t in targets])
    gold_ent_start = jnp.concatenate([t['ent_start_index'] for t in targets])
    gold_ent_end = jnp.concatenate([t['ent_end_index'] for t in targets])

    cost = entity_match_cost(
        outputs['ent_type_logits'], outputs['p_left'], outputs['p_right'],
        gold_ent_type, gold_ent_start, gold_ent_end, **cost_kwargs)
    cost = np.asarray(jax.block_until_ready(cost)).astype(np.float32)

    num_gold = [int(t['ent_type'].shape[0]) for t in targets]
    splits = np.split(cost, np.cumsum(num_gold)[:-1], axis=-1)
    indices = [_linear_sum_assignment(c[i]) for i, c in enumerate(splits)]
    ent_indices = [(np.asarray(i, dtype=np.int64), np.asarray(j, dtype=np.int64))
                   for i, j in indices]
    return ent_indices, cost


def _reference_cost(ent_type_logits, p_left, p_right, gt, gs, ge):
    bsz, num_gen, num_classes = ent_type_logits.shape
    seq_len = p_left.shape[-1]
    pt = jax.nn.softmax(ent_type_logits.reshape(-1, num_classes), -1)
    pls = p_left.reshape(-1, seq_len)
    prs = p_right.reshape(-1, seq_len)
    ref = (-COST_ENT_TYPE * pt[:, gt]
           - COST_ENT_SPAN * (pls[:, gs] + prs[:, ge]))
    return np.asarray(jax.block_until_ready(ref.reshape(bsz, num_gen, -1)))


if __name__ == "__main__":
    key = jax.random.PRNGKey(0)

    # ------------------------------------------------------------------ test 1
    # Small end-to-end forward (cost kernel + host assignment), exact path.
    bsz, num_gen, num_classes, seq_len = 2, 12, 10, 24
    k1, k2, k3, k4 = jax.random.split(key, 4)
    ent_type_logits = jax.random.normal(k1, (bsz, num_gen, num_classes), jnp.float32)
    p_left = jax.nn.softmax(jax.random.normal(k2, (bsz, num_gen, seq_len), jnp.float32), -1)
    p_right = jax.nn.softmax(jax.random.normal(k3, (bsz, num_gen, seq_len), jnp.float32), -1)

    outputs = {'ent_type_logits': ent_type_logits, 'p_left': p_left, 'p_right': p_right}
    targets = [
        {'ent_type': jnp.array([1, 3, 7], jnp.int32),
         'ent_start_index': jnp.array([2, 5, 9], jnp.int32),
         'ent_end_index': jnp.array([3, 6, 12], jnp.int32)},
        {'ent_type': jnp.array([4, 2], jnp.int32),
         'ent_start_index': jnp.array([0, 8], jnp.int32),
         'ent_end_index': jnp.array([1, 10], jnp.int32)},
    ]

    ent_indices, cost = entity_matcher_forward(
        outputs, targets, compute_dtype=jnp.float32, approx_reciprocal=False)

    gt = jnp.concatenate([t['ent_type'] for t in targets])
    gs = jnp.concatenate([t['ent_start_index'] for t in targets])
    ge = jnp.concatenate([t['ent_end_index'] for t in targets])
    ref = _reference_cost(ent_type_logits, p_left, p_right, gt, gs, ge)
    assert cost.shape == ref.shape
    assert np.allclose(cost, ref, atol=1e-4), "pallas cost mismatch (exact path)"

    num_gold = [int(t['ent_type'].shape[0]) for t in targets]
    for (i, j), ng in zip(ent_indices, num_gold):
        assert i.shape == j.shape == (ng,)
        assert len(set(i.tolist())) == ng and i.max() < num_gen and i.min() >= 0
        assert sorted(j.tolist()) == list(range(ng))

    # ------------------------------------------------------------------ test 2
    # Larger cost-only check exercising the 2-step parallel row grid and the
    # default bf16 compute path (no wrapper-side padding: 400 = 2 * 200).
    bsz2, num_gen2, num_classes2, seq_len2 = 4, 100, 21, 64
    k5, k6, k7 = jax.random.split(k4, 3)
    tl2 = jax.random.normal(k5, (bsz2, num_gen2, num_classes2), jnp.float32)
    pleft2 = jax.nn.softmax(jax.random.normal(k6, (bsz2, num_gen2, seq_len2), jnp.float32), -1)
    pright2 = jax.nn.softmax(jax.random.normal(k7, (bsz2, num_gen2, seq_len2), jnp.float32), -1)
    gt2 = jnp.array([0, 5, 7, 11, 20, 3, 2, 9, 14], jnp.int32)
    gs2 = jnp.array([1, 8, 17, 30, 45, 2, 60, 33, 12], jnp.int32)
    ge2 = jnp.array([4, 10, 20, 35, 50, 6, 63, 40, 15], jnp.int32)

    cost2 = entity_match_cost(tl2, pleft2, pright2, gt2, gs2, ge2)  # bf16 path
    cost2 = np.asarray(jax.block_until_ready(cost2))
    ref2 = _reference_cost(tl2, pleft2, pright2, gt2, gs2, ge2)
    assert cost2.shape == ref2.shape
    assert np.allclose(cost2, ref2, atol=5e-2), "pallas cost mismatch (bf16 path)"

    print("KERNEL_OK")
</pallas_src>

<mosaic_0001>
module attributes {stable_mosaic.version = 11 : i64} {
  func.func @_cost_kernel(%arg0: i32, %arg1: i32, %arg2: memref<8x10xf32, #tpu.memory_space<vmem>>, %arg3: memref<8x24xf32, #tpu.memory_space<vmem>>, %arg4: memref<8x24xf32, #tpu.memory_space<vmem>>, %arg5: memref<10x128xf32, #tpu.memory_space<vmem>>, %arg6: memref<24x128xf32, #tpu.memory_space<vmem>>, %arg7: memref<24x128xf32, #tpu.memory_space<vmem>>, %arg8: memref<8x128xf32, #tpu.memory_space<vmem>>, %arg9: memref<8x128xf32, #tpu.memory_space<vmem>>) attributes {dimension_semantics = [#tpu.dimension_semantics<parallel>, #tpu.dimension_semantics<parallel>], iteration_bounds = array<i64: 3, 1>, scalar_prefetch = 0 : i64, scratch_operands = 1 : i64, tpu.core_type = #tpu.core_type<tc>, window_params = [{transform_indices = @transform_0, window_bounds = array<i64: 8, 10>}, {transform_indices = @transform_1, window_bounds = array<i64: 8, 24>}, {transform_indices = @transform_2, window_bounds = array<i64: 8, 24>}, {transform_indices = @transform_3, window_bounds = array<i64: 10, 128>}, {transform_indices = @transform_4, window_bounds = array<i64: 24, 128>}, {transform_indices = @transform_5, window_bounds = array<i64: 24, 128>}, {transform_indices = @transform_6, window_bounds = array<i64: 8, 128>}]} {
    %c0 = arith.constant 0 : index
    %c0_0 = arith.constant 0 : index
    %0 = vector.load %arg2[%c0, %c0_0] : memref<8x10xf32, #tpu.memory_space<vmem>>, vector<8x10xf32>
    %cst = arith.constant dense<0xFF800000> : vector<8xf32>
    %1 = vector.multi_reduction <maximumf>, %0, %cst [1] : vector<8x10xf32> to vector<8xf32>
    %2 = vector.shape_cast %1 : vector<8xf32> to vector<8x1xf32>
    %3 = vector.broadcast %2 : vector<8x1xf32> to vector<8x10xf32>
    %4 = arith.subf %0, %3 : vector<8x10xf32>
    %5 = math.exp %4 : vector<8x10xf32>
    %cst_1 = arith.constant dense<0.000000e+00> : vector<8xf32>
    %6 = vector.multi_reduction <add>, %5, %cst_1 [1] : vector<8x10xf32> to vector<8xf32>
    %7 = vector.shape_cast %6 : vector<8xf32> to vector<8x1xf32>
    %8 = tpu.reciprocal %7 : vector<8x1xf32> -> vector<8x1xf32>
    %9 = vector.broadcast %8 : vector<8x1xf32> to vector<8x10xf32>
    %10 = arith.mulf %5, %9 : vector<8x10xf32>
    %c0_2 = arith.constant 0 : index
    %c0_3 = arith.constant 0 : index
    %11 = vector.load %arg5[%c0_2, %c0_3] : memref<10x128xf32, #tpu.memory_space<vmem>>, vector<10x128xf32>
    %cst_4 = arith.constant dense<0.000000e+00> : vector<8x128xf32>
    %12 = tpu.matmul %10, %11, %cst_4 {dimension_numbers = #tpu.dot_dimension_numbers<[1], [0], [0], [1], [0, 0, 1, 1], [], []>} : vector<8x10xf32>, vector<10x128xf32>, vector<8x128xf32> -> vector<8x128xf32>
    %c0_5 = arith.constant 0 : index
    %c0_6 = arith.constant 0 : index
    %13 = vector.load %arg9[%c0_5, %c0_6] : memref<8x128xf32, #tpu.memory_space<vmem>>, vector<8x128xf32>
    tpu.vector_store %arg9[%c0_5, %c0_6], %12 {strides = array<i32>} : memref<8x128xf32, #tpu.memory_space<vmem>>, vector<8x128xf32>,
    %c0_7 = arith.constant 0 : index
    %c0_8 = arith.constant 0 : index
    %14 = vector.load %arg9[%c0_7, %c0_8] : memref<8x128xf32, #tpu.memory_space<vmem>>, vector<8x128xf32>
    %c0_9 = arith.constant 0 : index
    %c0_10 = arith.constant 0 : index
    %15 = vector.load %arg3[%c0_9, %c0_10] : memref<8x24xf32, #tpu.memory_space<vmem>>, vector<8x24xf32>
    %c0_11 = arith.constant 0 : index
    %c0_12 = arith.constant 0 : index
    %16 = vector.load %arg6[%c0_11, %c0_12] : memref<24x128xf32, #tpu.memory_space<vmem>>, vector<24x128xf32>
    %cst_13 = arith.constant dense<0.000000e+00> : vector<8x128xf32>
    %17 = tpu.matmul %15, %16, %cst_13 {dimension_numbers = #tpu.dot_dimension_numbers<[1], [0], [0], [1], [0, 0, 1, 1], [], []>} : vector<8x24xf32>, vector<24x128xf32>, vector<8x128xf32> -> vector<8x128xf32>
    %18 = arith.addf %14, %17 : vector<8x128xf32>
    %c0_14 = arith.constant 0 : index
    %c0_15 = arith.constant 0 : index
    %19 = vector.load %arg9[%c0_14, %c0_15] : memref<8x128xf32, #tpu.memory_space<vmem>>, vector<8x128xf32>
    tpu.vector_store %arg9[%c0_14, %c0_15], %18 {strides = array<i32>} : memref<8x128xf32, #tpu.memory_space<vmem>>, vector<8x128xf32>,
    %c0_16 = arith.constant 0 : index
    %c0_17 = arith.constant 0 : index
    %20 = vector.load %arg9[%c0_16, %c0_17] : memref<8x128xf32, #tpu.memory_space<vmem>>, vector<8x128xf32>
    %c0_18 = arith.constant 0 : index
    %c0_19 = arith.constant 0 : index
    %21 = vector.load %arg4[%c0_18, %c0_19] : memref<8x24xf32, #tpu.memory_space<vmem>>, vector<8x24xf32>
    %c0_20 = arith.constant 0 : index
    %c0_21 = arith.constant 0 : index
    %22 = vector.load %arg7[%c0_20, %c0_21] : memref<24x128xf32, #tpu.memory_space<vmem>>, vector<24x128xf32>
    %cst_22 = arith.constant dense<0.000000e+00> : vector<8x128xf32>
    %23 = tpu.matmul %21, %22, %cst_22 {dimension_numbers = #tpu.dot_dimension_numbers<[1], [0], [0], [1], [0, 0, 1, 1], [], []>} : vector<8x24xf32>, vector<24x128xf32>, vector<8x128xf32> -> vector<8x128xf32>
    %24 = arith.addf %20, %23 : vector<8x128xf32>
    %c0_23 = arith.constant 0 : index
    %c0_24 = arith.constant 0 : index
    %25 = vector.load %arg9[%c0_23, %c0_24] : memref<8x128xf32, #tpu.memory_space<vmem>>, vector<8x128xf32>
    tpu.vector_store %arg9[%c0_23, %c0_24], %24 {strides = array<i32>} : memref<8x128xf32, #tpu.memory_space<vmem>>, vector<8x128xf32>,
    %c0_25 = arith.constant 0 : index
    %c0_26 = arith.constant 0 : index
    %26 = vector.load %arg9[%c0_25, %c0_26] : memref<8x128xf32, #tpu.memory_space<vmem>>, vector<8x128xf32>
    %c0_27 = arith.constant 0 : index
    %c0_28 = arith.constant 0 : index
    %27 = vector.load %arg8[%c0_27, %c0_28] : memref<8x128xf32, #tpu.memory_space<vmem>>, vector<8x128xf32>
    tpu.vector_store %arg8[%c0_27, %c0_28], %26 {strides = array<i32>} : memref<8x128xf32, #tpu.memory_space<vmem>>, vector<8x128xf32>,
    return
  }
  func.func @transform_0(%arg0: i32, %arg1: i32) -> (i32, i32) {
    %c0_i32 = arith.constant 0 : i32
    %c0_i32_0 = arith.constant 0 : i32
    return %arg0, %c0_i32 : i32, i32
  }
  func.func @transform_1(%arg0: i32, %arg1: i32) -> (i32, i32) {
    %c0_i32 = arith.constant 0 : i32
    %c0_i32_0 = arith.constant 0 : i32
    return %arg0, %c0_i32 : i32, i32
  }
  func.func @transform_2(%arg0: i32, %arg1: i32) -> (i32, i32) {
    %c0_i32 = arith.constant 0 : i32
    %c0_i32_0 = arith.constant 0 : i32
    return %arg0, %c0_i32 : i32, i32
  }
  func.func @transform_3(%arg0: i32, %arg1: i32) -> (i32, i32) {
    %c0_i32 = arith.constant 0 : i32
    %c0_i32_0 = arith.constant 0 : i32
    return %c0_i32, %arg1 : i32, i32
  }
  func.func @transform_4(%arg0: i32, %arg1: i32) -> (i32, i32) {
    %c0_i32 = arith.constant 0 : i32
    %c0_i32_0 = arith.constant 0 : i32
    return %c0_i32, %arg1 : i32, i32
  }
  func.func @transform_5(%arg0: i32, %arg1: i32) -> (i32, i32) {
    %c0_i32 = arith.constant 0 : i32
    %c0_i32_0 = arith.constant 0 : i32
    return %c0_i32, %arg1 : i32, i32
  }
  func.func @transform_6(%arg0: i32, %arg1: i32) -> (i32, i32) {
    %c0_i32 = arith.constant 0 : i32
    return %arg0, %arg1 : i32, i32
  }
}

</mosaic_0001>

<llo_original>
// kernel: tpu_custom_call.1
$region0: #{tpu_custom_call.1}
  #allocation0 [shape = 'u32[]', space=smem, size = 0x4, offset = 0x4, fixed_abs, tag = 'smem constant byte address 0x4 - core index']
  #allocation1 [shape = 'u32[72,128]{1,0:T(1,128)}', space=vmem, size = 0x9000, scoped, tag = 'internal scratch']
  #allocation2 [shape = 'f32[8,128]{1,0:T(8,128)}', space=vmem, size = 0x1000, scoped, tag = 'scratch operand']
  %s0 = inlined_call_operand.vmem [shape: f32[24,10], index: 0, kind: input, shape index: {}]
  %s1 = inlined_call_operand.vmem [shape: f32[24,24], index: 1, kind: input, shape index: {}]
  %s2 = inlined_call_operand.hbm [shape: f32[24,24], index: 2, kind: input, shape index: {}]
  %s3 = inlined_call_operand.vmem [shape: f32[10,128], index: 3, kind: input, shape index: {}]
  %s4 = inlined_call_operand.hbm [shape: f32[24,128], index: 4, kind: input, shape index: {}]
  %s5 = inlined_call_operand.hbm [shape: f32[24,128], index: 5, kind: input, shape index: {}]
  %s6 = inlined_call_operand.hbm [shape: f32[24,128], index: 6, kind: output, shape index: {}]
  %s7 = sld [smem:[#allocation0]]
  $region69: #{tpu_custom_call.1} parent=0
    _
  %s9 = ssub.s32 1, %s7
  %s10 = scalar_select 0, %s9, %s7
  $region1: #{tpu_custom_call.1} parent=0
    #allocation3 [shape = 'u8[8192]{0}', space=vmem, size = 0x2000, scoped, tag = 'input window, operand 2']
    #allocation4 [shape = 's32[2]{0}', space=sflag, size = 0x8, scoped, tag = 'scoped memory for tpu_custom_call.1']
    #allocation5 [shape = 's32[2]{0}', space=sflag, size = 0x8, scoped, tag = 'scoped memory for tpu_custom_call.1']
    #allocation6 [shape = 'u8[12288]{0}', space=vmem, size = 0x3000, scoped, tag = 'input window, operand 4, single buffered']
    #allocation7 [shape = 's32[1]{0}', space=sflag, size = 0x4, scoped, tag = 'scoped memory for tpu_custom_call.1']
    #allocation8 [shape = 'u8[12288]{0}', space=vmem, size = 0x3000, scoped, tag = 'input window, operand 5, single buffered']
    #allocation9 [shape = 'u8[8192]{0}', space=vmem, size = 0x2000, scoped, tag = 'output window, operand 0']
    %11 = vsyncpa [#allocation4], 0
    %s12 = scalar_lea.sflag [#allocation4], 1
    %13 = vsyncpa %s12, 0
    %14 = vsyncpa [#allocation7], 0
    %15 = vsyncpa [#allocation5], 0
    %s16 = scalar_lea.sflag [#allocation5], 1
    %17 = vsyncpa %s16, 0
    loop: start=0, step=1, limit=5
    $region2: #{tpu_custom_call.1} parent=1 // loop_pre_header
      _
    $region3: #{tpu_custom_call.1} parent=1 // loop_header
      %s19 = sphi 0, %s23
      %p20 = scmp.ge.s32.totalorder %s19, 5
      %s26 = sphi 0, %s38
      %s27 = sphi 0, %s34
      %s28 = sphi 0, %s26
      %s29 = sphi 0, %s27
      %s30 = sphi 0, %s28
      %s31 = sphi 0, %s29
      %s41 = sphi 0, %s43
      %s44 = sphi 0, %s41
      %s45 = sphi 0, %s44
      %s61 = sphi 0, %s45
      %s67 = sphi 0, %s69
      %s70 = sphi 0, %s67
      %s71 = sphi 0, %s70
      %s87 = sphi 0, %s71
      %s93 = sphi 0, %s95
      %s96 = sphi 0, %s93
      %s97 = sphi 0, %s96
      %s113 = sphi 0, %s97
      %s119 = sphi 0, %s121
      %s122 = sphi 0, %s119
      %s123 = sphi 0, %s122
      %s139 = sphi 0, %s123
      %s145 = sphi 0, %s147
      %s148 = sphi 0, %s145
      %s149 = sphi 0, %s148
      %s165 = sphi 0, %s149
      %s171 = sphi 0, %s173
      %s174 = sphi 0, %s171
      %s175 = sphi 0, %s174
      %s191 = sphi 0, %s175
      %s199 = sphi 0, %s201
      %s202 = sphi 0, %s199
      %s203 = sphi 0, %s202
      %s219 = sphi 0, %s203
    $region4: #{tpu_custom_call.1} parent=1 // loop_header_branch
      %22 = sbr.rel (%p20) target = $region8
    $region5: #{tpu_custom_call.1} parent=1 // loop_body
      %s24 = ssub.s32 %s19, 1
      %s25 = ssub.s32 %s19, 2
      %s32 = sadd.s32 1, %s27
      %p33 = scmp.ge.s32.totalorder %s32, 1
      %s34 = scalar_select %p33, 0, %s32
      %s35 = sadd.s32 1, %s26
      %s36 = scalar_select %p33, %s35, %s26
      %p37 = scmp.ge.s32.totalorder %s36, 3
      %s38 = scalar_select %p37, 0, %s36
      %s39 = ssub.s32 %s26, %s38
      %p40 = scmp.eq.s32.totalorder %s39, 0
      %s42 = sadd.s32 %s41, 1
      %s43 = scalar_select %p40, %s41, %s42
      %p46 = pneg %p40
      %p47 = scmp.eq.s32.totalorder %s19, 2
      %p48 = por %p46, %p47
      %p49 = scmp.ne.s32.totalorder %s41, %s44
      %p50 = scmp.eq.s32.totalorder %s19, 0
      %p51 = por %p49, %p50
      %p52 = scmp.ne.s32.totalorder %s41, %s44
      %p53 = scmp.eq.s32.totalorder %s24, 2
      %p54 = por %p52, %p53
      %p55 = scmp.ne.s32.totalorder %s44, %s45
      %p56 = scmp.eq.s32.totalorder %s24, 0
      %p57 = por %p55, %p56
      %p58 = scmp.ne.s32.totalorder %s44, %s45
      %p59 = scmp.eq.s32.totalorder %s25, 2
      %p60 = por %p58, %p59
      %p62 = scmp.ne.s32.totalorder %s45, %s61
      %p63 = scmp.eq.s32.totalorder %s25, 0
      %p64 = por %p62, %p63
      %s65 = ssub.s32 %s26, %s38
      %p66 = scmp.eq.s32.totalorder %s65, 0
      %s68 = sadd.s32 %s67, 1
      %s69 = scalar_select %p66, %s67, %s68
      %p72 = pneg %p66
      %p73 = scmp.eq.s32.totalorder %s19, 2
      %p74 = por %p72, %p73
      %p75 = scmp.ne.s32.totalorder %s67, %s70
      %p76 = scmp.eq.s32.totalorder %s19, 0
      %p77 = por %p75, %p76
      %p78 = scmp.ne.s32.totalorder %s67, %s70
      %p79 = scmp.eq.s32.totalorder %s24, 2
      %p80 = por %p78, %p79
      %p81 = scmp.ne.s32.totalorder %s70, %s71
      %p82 = scmp.eq.s32.totalorder %s24, 0
      %p83 = por %p81, %p82
      %p84 = scmp.ne.s32.totalorder %s70, %s71
      %p85 = scmp.eq.s32.totalorder %s25, 2
      %p86 = por %p84, %p85
      %p88 = scmp.ne.s32.totalorder %s71, %s87
      %p89 = scmp.eq.s32.totalorder %s25, 0
      %p90 = por %p88, %p89
      %s91 = ssub.s32 %s26, %s38
      %p92 = scmp.eq.s32.totalorder %s91, 0
      %s94 = sadd.s32 %s93, 1
      %s95 = scalar_select %p92, %s93, %s94
      %p98 = pneg %p92
      %p99 = scmp.eq.s32.totalorder %s19, 2
      %p100 = por %p98, %p99
      %p101 = scmp.ne.s32.totalorder %s93, %s96
      %p102 = scmp.eq.s32.totalorder %s19, 0
      %p103 = por %p101, %p102
      %p104 = scmp.ne.s32.totalorder %s93, %s96
      %p105 = scmp.eq.s32.totalorder %s24, 2
      %p106 = por %p104, %p105
      %p107 = scmp.ne.s32.totalorder %s96, %s97
      %p108 = scmp.eq.s32.totalorder %s24, 0
      %p109 = por %p107, %p108
      %p110 = scmp.ne.s32.totalorder %s96, %s97
      %p111 = scmp.eq.s32.totalorder %s25, 2
      %p112 = por %p110, %p111
      %p114 = scmp.ne.s32.totalorder %s97, %s113
      %p115 = scmp.eq.s32.totalorder %s25, 0
      %p116 = por %p114, %p115
      %s117 = ssub.s32 %s27, %s34
      %p118 = scmp.eq.s32.totalorder %s117, 0
      %s120 = sadd.s32 %s119, 1
      %s121 = scalar_select %p118, %s119, %s120
      %p124 = pneg %p118
      %p125 = scmp.eq.s32.totalorder %s19, 2
      %p126 = por %p124, %p125
      %p127 = scmp.ne.s32.totalorder %s119, %s122
      %p128 = scmp.eq.s32.totalorder %s19, 0
      %p129 = por %p127, %p128
      %p130 = scmp.ne.s32.totalorder %s119, %s122
      %p131 = scmp.eq.s32.totalorder %s24, 2
      %p132 = por %p130, %p131
      %p133 = scmp.ne.s32.totalorder %s122, %s123
      %p134 = scmp.eq.s32.totalorder %s24, 0
      %p135 = por %p133, %p134
      %p136 = scmp.ne.s32.totalorder %s122, %s123
      %p137 = scmp.eq.s32.totalorder %s25, 2
      %p138 = por %p136, %p137
      %p140 = scmp.ne.s32.totalorder %s123, %s139
      %p141 = scmp.eq.s32.totalorder %s25, 0
      %p142 = por %p140, %p141
      %s143 = ssub.s32 %s27, %s34
      %p144 = scmp.eq.s32.totalorder %s143, 0
      %s146 = sadd.s32 %s145, 1
      %s147 = scalar_select %p144, %s145, %s146
      %p150 = pneg %p144
      %p151 = scmp.eq.s32.totalorder %s19, 2
      %p152 = por %p150, %p151
      %p153 = scmp.ne.s32.totalorder %s145, %s148
      %p154 = scmp.eq.s32.totalorder %s19, 0
      %p155 = por %p153, %p154
      %p156 = scmp.ne.s32.totalorder %s145, %s148
      %p157 = scmp.eq.s32.totalorder %s24, 2
      %p158 = por %p156, %p157
      %p159 = scmp.ne.s32.totalorder %s148, %s149
      %p160 = scmp.eq.s32.totalorder %s24, 0
      %p161 = por %p159, %p160
      %p162 = scmp.ne.s32.totalorder %s148, %s149
      %p163 = scmp.eq.s32.totalorder %s25, 2
      %p164 = por %p162, %p163
      %p166 = scmp.ne.s32.totalorder %s149, %s165
      %p167 = scmp.eq.s32.totalorder %s25, 0
      %p168 = por %p166, %p167
      %s169 = ssub.s32 %s27, %s34
      %p170 = scmp.eq.s32.totalorder %s169, 0
      %s172 = sadd.s32 %s171, 1
      %s173 = scalar_select %p170, %s171, %s172
      %p176 = pneg %p170
      %p177 = scmp.eq.s32.totalorder %s19, 2
      %p178 = por %p176, %p177
      %p179 = scmp.ne.s32.totalorder %s171, %s174
      %p180 = scmp.eq.s32.totalorder %s19, 0
      %p181 = por %p179, %p180
      %p182 = scmp.ne.s32.totalorder %s171, %s174
      %p183 = scmp.eq.s32.totalorder %s24, 2
      %p184 = por %p182, %p183
      %p185 = scmp.ne.s32.totalorder %s174, %s175
      %p186 = scmp.eq.s32.totalorder %s24, 0
      %p187 = por %p185, %p186
      %p188 = scmp.ne.s32.totalorder %s174, %s175
      %p189 = scmp.eq.s32.totalorder %s25, 2
      %p190 = por %p188, %p189
      %p192 = scmp.ne.s32.totalorder %s175, %s191
      %p193 = scmp.eq.s32.totalorder %s25, 0
      %p194 = por %p192, %p193
      %s195 = ssub.s32 %s26, %s38
      %s196 = ssub.s32 %s27, %s34
      %s197 = sor.u32 %s195, %s196
      %p198 = scmp.eq.s32.totalorder %s197, 0
      %s200 = sadd.s32 %s199, 1
      %s201 = scalar_select %p198, %s199, %s200
      %p204 = pneg %p198
      %p205 = scmp.eq.s32.totalorder %s19, 2
      %p206 = por %p204, %p205
      %p207 = scmp.ne.s32.totalorder %s199, %s202
      %p208 = scmp.eq.s32.totalorder %s19, 0
      %p209 = por %p207, %p208
      %p210 = scmp.ne.s32.totalorder %s199, %s202
      %p211 = scmp.eq.s32.totalorder %s24, 2
      %p212 = por %p210, %p211
      %p213 = scmp.ne.s32.totalorder %s202, %s203
      %p214 = scmp.eq.s32.totalorder %s24, 0
      %p215 = por %p213, %p214
      %p216 = scmp.ne.s32.totalorder %s202, %s203
      %p217 = scmp.eq.s32.totalorder %s25, 2
      %p218 = por %p216, %p217
      %p220 = scmp.ne.s32.totalorder %s203, %s219
      %p221 = scmp.eq.s32.totalorder %s25, 0
      %p222 = por %p220, %p221
      %p223 = scmp.le.s32.totalorder 1, %s19
      %p224 = scmp.lt.s32.totalorder %s19, 4
      %p225 = pnand %p223, %p224
      %p226 = pneg %p225
      // Predicated region
      $region9: #{tpu_custom_call.1} parent=5 // pred_check
        _
      $region10: #{tpu_custom_call.1} parent=5 // pred_check_branch
        %228 = sbr.rel (%p225) target = $region12
      $region11: #{tpu_custom_call.1} parent=5 // pred_region
        %s229 = ssub.s32 %s19, 1
        // Predicated region
        $region13: #{tpu_custom_call.1} parent=11 // pred_check
          %p230 = pneg %p135
        $region14: #{tpu_custom_call.1} parent=11 // pred_check_branch
          %232 = sbr.rel (%p230) target = $region16
        $region15: #{tpu_custom_call.1} parent=11 // pred_region
          %p233 = scmp.lt.s32.totalorder %s29, 0
          %s234 = scalar_select %p233, %s29, 0
          %s235 = smul.addr %s234, 8
          %s236 = scalar_lea.vmem %s3, %s235
        $region16: #{tpu_custom_call.1} parent=11 // pred_fallthru
          _
        // Predicated region
        $region17: #{tpu_custom_call.1} parent=11 // pred_check
          %p237 = pneg %p161
        $region18: #{tpu_custom_call.1} parent=11 // pred_check_branch
          %239 = sbr.rel (%p237) target = $region20
        $region19: #{tpu_custom_call.1} parent=11 // pred_region
          %241 = vsyncadd [#allocation7], 0
          %s242 = smul.addr %s29, 8
          %s243 = scalar_lea.hbm %s4, %s242
          %s244 = sshll.u32 %s243, 4
          %s245 = int_to_ptr.hbm [resolvable:$true] %s244
          %s246 = sshll.u32 [#allocation6], 4
          %s247 = int_to_ptr.vmem [resolvable:$true] %s246
          %252 = dma.hbm_to_vmem [thread:$0]  %s245, 384, %s247, [#allocation7], 128, 128, 8
        $region20: #{tpu_custom_call.1} parent=11 // pred_fallthru
          _
        // Predicated region
        $region21: #{tpu_custom_call.1} parent=11 // pred_check
          %p253 = pneg %p187
        $region22: #{tpu_custom_call.1} parent=11 // pred_check_branch
          %255 = sbr.rel (%p253) target = $region24
        $region23: #{tpu_custom_call.1} parent=11 // pred_region
          %257 = vsyncadd [#allocation7], 0
          %s258 = smul.addr %s29, 8
          %s259 = scalar_lea.hbm %s5, %s258
          %s260 = sshll.u32 %s259, 4
          %s261 = int_to_ptr.hbm [resolvable:$true] %s260
          %s262 = sshll.u32 [#allocation8], 4
          %s263 = int_to_ptr.vmem [resolvable:$true] %s262
          %268 = dma.hbm_to_vmem [thread:$0]  %s261, 384, %s263, [#allocation7], 128, 128, 8
        $region24: #{tpu_custom_call.1} parent=11 // pred_fallthru
          _
      $region12: #{tpu_custom_call.1} parent=5 // pred_fallthru
        _
      %p269 = scmp.lt.s32.totalorder %s19, 3
      // Predicated region
      $region25: #{tpu_custom_call.1} parent=5 // pred_check
        %p270 = pneg %p269
      $region26: #{tpu_custom_call.1} parent=5 // pred_check_branch
        %272 = sbr.rel (%p270) target = $region28
      $region27: #{tpu_custom_call.1} parent=5 // pred_region
        // Predicated region
        $region29: #{tpu_custom_call.1} parent=27 // pred_check
          %p273 = pneg %p51
        $region30: #{tpu_custom_call.1} parent=27 // pred_check_branch
          %275 = sbr.rel (%p273) target = $region32
        $region31: #{tpu_custom_call.1} parent=27 // pred_region
          %p276 = scmp.lt.s32.totalorder %s26, 2
          %s277 = scalar_select %p276, %s26, 2
          %s278 = smul.addr %s277, 8
          %s279 = scalar_lea.vmem %s0, %s278
        $region32: #{tpu_custom_call.1} parent=27 // pred_fallthru
          _
        // Predicated region
        $region33: #{tpu_custom_call.1} parent=27 // pred_check
          %p280 = pneg %p77
        $region34: #{tpu_custom_call.1} parent=27 // pred_check_branch
          %282 = sbr.rel (%p280) target = $region36
        $region35: #{tpu_custom_call.1} parent=27 // pred_region
          %p283 = scmp.lt.s32.totalorder %s26, 2
          %s284 = scalar_select %p283, %s26, 2
          %s285 = smul.addr %s284, 8
          %s286 = scalar_lea.vmem %s1, %s285
        $region36: #{tpu_custom_call.1} parent=27 // pred_fallthru
          _
        // Predicated region
        $region37: #{tpu_custom_call.1} parent=27 // pred_check
          %p287 = pneg %p103
        $region38: #{tpu_custom_call.1} parent=27 // pred_check_branch
          %289 = sbr.rel (%p287) target = $region40
        $region39: #{tpu_custom_call.1} parent=27 // pred_region
          %s290 = sand.u32 %s93, 1
          %s291 = scalar_lea.sflag [#allocation4], %s290
          %s292 = sand.u32 %s93, 1
          %s293 = smul.addr %s292, 8
          %s294 = scalar_lea.vmem [#allocation3], %s293
          %296 = vsyncadd %s291, 0
          %s297 = smul.addr %s26, 8
          %s298 = scalar_lea.hbm %s2, %s297
          %s300 = sshll.u32 %s298, 4
          %s301 = int_to_ptr.hbm [resolvable:$true] %s300
          %s302 = sshll.u32 %s294, 4
          %s303 = int_to_ptr.vmem [resolvable:$true] %s302
          %305 = dma.hbm_to_vmem [thread:$0]  %s301, 128, %s303, %s291
        $region40: #{tpu_custom_call.1} parent=27 // pred_fallthru
          _
      $region28: #{tpu_custom_call.1} parent=5 // pred_fallthru
        _
      %p306 = scmp.le.s32.totalorder 1, %s19
      %p307 = scmp.lt.s32.totalorder %s19, 4
      %p308 = pnand %p306, %p307
      %p309 = pneg %p308
      // Predicated region
      $region41: #{tpu_custom_call.1} parent=5 // pred_check
        _
      $region42: #{tpu_custom_call.1} parent=5 // pred_check_branch
        %311 = sbr.rel (%p308) target = $region44
      $region43: #{tpu_custom_call.1} parent=5 // pred_region
        %s312 = ssub.s32 %s19, 1
        %s313 = sand.u32 %s96, 1
        %s314 = scalar_lea.sflag [#allocation4], %s313
        %s315 = sand.u32 %s96, 1
        %s316 = smul.addr %s315, 8
        %s317 = scalar_lea.vmem [#allocation3], %s316
        // Predicated region
        $region45: #{tpu_custom_call.1} parent=43 // pred_check
          %p318 = pneg %p109
        $region46: #{tpu_custom_call.1} parent=43 // pred_check_branch
          %320 = sbr.rel (%p318) target = $region48
        $region47: #{tpu_custom_call.1} parent=43 // pred_region
          %322 = dma.done %s314, 128
        $region48: #{tpu_custom_call.1} parent=43 // pred_fallthru
          _
        // Predicated region
        $region49: #{tpu_custom_call.1} parent=43 // pred_check
          %p323 = pneg %p161
        $region50: #{tpu_custom_call.1} parent=43 // pred_check_branch
          %325 = sbr.rel (%p323) target = $region52
        $region51: #{tpu_custom_call.1} parent=43 // pred_region
          %327 = dma.done [#allocation7], 384
        $region52: #{tpu_custom_call.1} parent=43 // pred_fallthru
          _
        // Predicated region
        $region53: #{tpu_custom_call.1} parent=43 // pred_check
          %p328 = pneg %p187
        $region54: #{tpu_custom_call.1} parent=43 // pred_check_branch
          %330 = sbr.rel (%p328) target = $region56
        $region55: #{tpu_custom_call.1} parent=43 // pred_region
          %332 = dma.done [#allocation7], 384
        $region56: #{tpu_custom_call.1} parent=43 // pred_fallthru
          _
        %p333 = scmp.lt.s32.totalorder %s28, 2
        %s334 = scalar_select %p333, %s28, 2
        %s335 = smul.addr %s334, 8
        %s336 = scalar_lea.vmem %s0, %s335
        %p337 = pneg %p57
        %p338 = pneg %p54
        %p339 = scmp.lt.s32.totalorder %s28, 2
        %s340 = scalar_select %p339, %s28, 2
        %s341 = smul.addr %s340, 8
        %s342 = scalar_lea.vmem %s1, %s341
        %p343 = pneg %p83
        %p344 = pneg %p80
        %s345 = sand.u32 %s96, 1
        %s346 = scalar_lea.sflag [#allocation4], %s345
        %s347 = sand.u32 %s96, 1
        %s348 = smul.addr %s347, 8
        %s349 = scalar_lea.vmem [#allocation3], %s348
        %p350 = pneg %p109
        %p351 = pneg %p106
        %p352 = scmp.lt.s32.totalorder %s29, 0
        %s353 = scalar_select %p352, %s29, 0
        %s354 = smul.addr %s353, 8
        %s355 = scalar_lea.vmem %s3, %s354
        %p356 = pneg %p135
        %p357 = pneg %p132
        %p358 = pneg %p161
        %p359 = pneg %p158
        %p360 = pneg %p187
        %p361 = pneg %p184
        %p362 = pneg %p215
        %p363 = pneg %p212
        %s364 = sand.u32 %s202, 1
        %s365 = scalar_lea.sflag [#allocation5], %s364
        %s366 = sand.u32 %s202, 1
        %s367 = smul.addr %s366, 8
        %s368 = scalar_lea.vmem [#allocation9], %s367
        %p369 = scmp.lt.s32.totalorder %s28, 2
        %s370 = scalar_select %p369, %s28, 2
        %s371 = smul.addr %s370, 8
        %s372 = scalar_lea.vmem %s0, %s371
        %p373 = scmp.lt.s32.totalorder %s28, 2
        %s374 = scalar_select %p373, %s28, 2
        %s375 = smul.addr %s374, 8
        %s376 = scalar_lea.vmem %s1, %s375
        %p377 = scmp.lt.s32.totalorder %s29, 0
        %s378 = scalar_select %p377, %s29, 0
        %s379 = smul.addr %s378, 8
        %s380 = scalar_lea.vmem %s3, %s379
        %v381 = vld [vmem:[%s372] sm:$0xff]
        %vm382 = vcmask 80896
        %v383 = vsel %vm382, %v381, -inf
        %384 = vmax.xlane.f32.xlu0 %v383
        %v385 = vpop.xlane.xlu0 %384
        %v386 = vsub.f32 %v381, %v385
        %v387 = vmul.f32 %v386, 1.442695
        %v388 = vpow.pop %v387
        %v389 = vsel %vm382, %v388, 0.0
        %390 = vadd.xlane.f32.xlu0 %v389
        %v391 = vpop.xlane.xlu0 %390
        %v392 = vrcp.pop %v391
        %v393 = vmul.f32 %v391, %v392
        %v394 = vsub.f32 1.0, %v393
        %v395 = vmul.f32 %v392, %v394
        %v396 = vadd.f32 %v392, %v395
        %vm397 = vweird.f32 %v391
        %vm398 = vweird.f32 %v392
        %vm399 = vmor %vm397, %vm398
        %v400 = vsel %vm399, %v392, %v396
        %v401 = vand.u32 2147483647, %v391
        %vm402 = vcmp.eq.f32.partialorder %v401, 8.507059e+37
        %v403 = vand.u32 %v391, 2147483648
        %v404 = vor.u32 1.1754944e-38, %v403
        %v405 = vsel %vm402, %v404, %v400
        %v406 = vmul.f32 %v388, %v405
        %v407 = vld [vmem:[%s380] sm:$0xff]
        %v408 = vld [vmem:[%s380 + $0x8] sm:$0x3]
        %v410 = vsel %vm382, %v406, 0
        %vm412 = vcmask 1041408
        %v414 = vsel %vm412, %v408, 0
        %416 = vmatpush.msra.mxu0 0.0
        %417 = vmatpush.msra.mxu0 0.0
        %418 = vmatpush.msra.mxu0 0.0
        %419 = vmatpush.msra.mxu0 0.0
        %420 = vmatpush.msra.mxu0 0.0
        %421 = vmatpush.msra.mxu0 0.0
        %422 = vmatpush.msra.mxu0 0.0
        %423 = vmatpush.msra.mxu0 0.0
        %424 = vmatpush.msra.mxu0 0.0
        %425 = vmatpush.msra.mxu0 0.0
        %426 = vmatpush.msra.mxu0 0.0
        %427 = vmatpush.msra.mxu0 0.0
        %428 = vmatpush.msra.mxu0 0.0
        %429 = vmatpush.msra.mxu0 0.0
        %430 = vmatpush.msra.mxu0 %v414
        %431 = vmatpush.msra.mxu0 %v407
        %432 = vmatmul.f32.gmra.mxu0 %v410
        %v433 = vpop.f32.mrf.mxu0
        %v434 = vadd.f32 0.0, %v433
        %435 = vdwg.mxu0
        %436 = vst [vmem:[#allocation2] sm:$0xff] %v434
        %v437 = vld [vmem:[#allocation2] sm:$0xff]
        %v438 = vld [vmem:[%s376] sm:$0xff]
        %v439 = vld [vmem:[#allocation6] sm:$0xff]
        %v440 = vld [vmem:[#allocation6 + $0x8] sm:$0xff]
        %v441 = vld [vmem:[#allocation6 + $0x10] sm:$0xff]
        %vm442 = vcmask 195584
        %v444 = vsel %vm442, %v438, 0
        %446 = vmatpush.msra.mxu0 0.0
        %447 = vmatpush.msra.mxu0 0.0
        %448 = vmatpush.msra.mxu0 0.0
        %449 = vmatpush.msra.mxu0 0.0
        %450 = vmatpush.msra.mxu0 0.0
        %451 = vmatpush.msra.mxu0 0.0
        %452 = vmatpush.msra.mxu0 0.0
        %453 = vmatpush.msra.mxu0 0.0
        %454 = vmatpush.msra.mxu0 0.0
        %455 = vmatpush.msra.mxu0 0.0
        %456 = vmatpush.msra.mxu0 0.0
        %457 = vmatpush.msra.mxu0 0.0
        %458 = vmatpush.msra.mxu0 0.0
        %459 = vmatpush.msra.mxu0 %v441
        %460 = vmatpush.msra.mxu0 %v440
        %461 = vmatpush.msra.mxu0 %v439
        %462 = vmatmul.f32.gmra.mxu0 %v444
        %v463 = vpop.f32.mrf.mxu0
        %v464 = vadd.f32 0.0, %v463
        %465 = vdwg.mxu0
        %v466 = vadd.f32 %v437, %v464
        %467 = vst [vmem:[#allocation2] sm:$0xff] %v466
        %v468 = vld [vmem:[#allocation2] sm:$0xff]
        %v469 = vld [vmem:[%s317] sm:$0xff]
        %v470 = vld [vmem:[#allocation8] sm:$0xff]
        %v471 = vld [vmem:[#allocation8 + $0x8] sm:$0xff]
        %v472 = vld [vmem:[#allocation8 + $0x10] sm:$0xff]
        %v474 = vsel %vm442, %v469, 0
        %476 = vmatpush.msra.mxu0 0.0
        %477 = vmatpush.msra.mxu0 0.0
        %478 = vmatpush.msra.mxu0 0.0
        %479 = vmatpush.msra.mxu0 0.0
        %480 = vmatpush.msra.mxu0 0.0
        %481 = vmatpush.msra.mxu0 0.0
        %482 = vmatpush.msra.mxu0 0.0
        %483 = vmatpush.msra.mxu0 0.0
        %484 = vmatpush.msra.mxu0 0.0
        %485 = vmatpush.msra.mxu0 0.0
        %486 = vmatpush.msra.mxu0 0.0
        %487 = vmatpush.msra.mxu0 0.0
        %488 = vmatpush.msra.mxu0 0.0
        %489 = vmatpush.msra.mxu0 %v472
        %490 = vmatpush.msra.mxu0 %v471
        %491 = vmatpush.msra.mxu0 %v470
        %492 = vmatmul.f32.gmra.mxu0 %v474
        %v493 = vpop.f32.mrf.mxu0
        %v494 = vadd.f32 0.0, %v493
        %495 = vdwg.mxu0
        %v496 = vadd.f32 %v468, %v494
        %497 = vst [vmem:[#allocation2] sm:$0xff] %v496
        %v498 = vld [vmem:[#allocation2] sm:$0xff]
        %499 = vst [vmem:[%s368] sm:$0xff] %v498
        %s500 = sand.u32 %s202, 1
        %s501 = scalar_lea.sflag [#allocation5], %s500
        %s502 = sand.u32 %s202, 1
        %s503 = smul.addr %s502, 8
        %s504 = scalar_lea.vmem [#allocation9], %s503
        // Predicated region
        $region57: #{tpu_custom_call.1} parent=43 // pred_check
          %p505 = pneg %p212
        $region58: #{tpu_custom_call.1} parent=43 // pred_check_branch
          %507 = sbr.rel (%p505) target = $region60
        $region59: #{tpu_custom_call.1} parent=43 // pred_region
          %509 = vsyncadd %s501, 0
          %s510 = sadd.s32 %s29, %s28
          %s511 = smul.addr %s510, 8
          %s512 = scalar_lea.hbm %s6, %s511
          %s514 = sshll.u32 %s504, 4
          %s515 = int_to_ptr.vmem [resolvable:$true] %s514
          %s516 = sshll.u32 %s512, 4
          %s517 = int_to_ptr.hbm [resolvable:$true] %s516
          %519 = dma.vmem_to_hbm [thread:$0]  %s515, 128, %s517, %s501
        $region60: #{tpu_custom_call.1} parent=43 // pred_fallthru
          _
      $region44: #{tpu_custom_call.1} parent=5 // pred_fallthru
        _
      %p520 = scmp.le.s32.totalorder 2, %s19
      // Predicated region
      $region61: #{tpu_custom_call.1} parent=5 // pred_check
        %p521 = pneg %p520
      $region62: #{tpu_custom_call.1} parent=5 // pred_check_branch
        %523 = sbr.rel (%p521) target = $region64
      $region63: #{tpu_custom_call.1} parent=5 // pred_region
        %s524 = ssub.s32 %s19, 2
        // Predicated region
        $region65: #{tpu_custom_call.1} parent=63 // pred_check
          %p525 = pneg %p218
        $region66: #{tpu_custom_call.1} parent=63 // pred_check_branch
          %527 = sbr.rel (%p525) target = $region68
        $region67: #{tpu_custom_call.1} parent=63 // pred_region
          %s528 = sand.u32 %s203, 1
          %s529 = scalar_lea.sflag [#allocation5], %s528
          %s530 = sand.u32 %s203, 1
          %s531 = smul.addr %s530, 8
          %s532 = scalar_lea.vmem [#allocation9], %s531
          %534 = dma.done %s529, 128
        $region68: #{tpu_custom_call.1} parent=63 // pred_fallthru
          _
      $region64: #{tpu_custom_call.1} parent=5 // pred_fallthru
        _
    $region6: #{tpu_custom_call.1} parent=1 // loop_footer
      %s23 = sadd.s32 1, %s19
    $region7: #{tpu_custom_call.1} parent=1 // loop_footer_branch
      %18 = sbr.rel target = $region3
    $region8: #{tpu_custom_call.1} parent=1 // loop_exit
      _
    %535 = vsyncpa [#allocation4], 1
    %s536 = scalar_lea.sflag [#allocation4], 1
    %537 = vsyncpa %s536, 1
    %538 = vsyncpa [#allocation7], 1
    %539 = vsyncpa [#allocation5], 1
    %s540 = scalar_lea.sflag [#allocation5], 1
    %541 = vsyncpa %s540, 1

</llo_original>
